<compile_context>
chip_gen: v7x
topology: tpu7x:2x2x1
jax: 0.10.0
libtpu: 0.0.40
codegen_flags: <defaults>
</compile_context>

<pallas_src>
import functools

import jax
import jax.numpy as jnp
from jax import lax
from jax.experimental import pallas as pl
from jax.experimental.pallas import tpu as pltpu

EPS = 1e-5
MOMENTUM = 0.1
_LANES = 128


# ---------------------------------------------------------------------------
# Tile / VMEM sizing
# ---------------------------------------------------------------------------
def _vmem_budget_bytes():
    """Per-generation budget (bytes) for the pipelined VMEM working set."""
    try:
        info = pltpu.get_tpu_info()
        cap = int(getattr(info, "vmem_capacity_bytes", 0) or 0)
    except Exception:
        cap = 0
    if cap >= (96 << 20):            # v5e / v6e: 128 MiB physical VMEM
        return 64 << 20
    if cap > 0:                      # v7x: 64 MiB physical VMEM
        return max(16 << 20, min(28 << 20, cap // 2))
    return 28 << 20                  # unknown: conservative, safe everywhere


def _divisors_desc(n):
    ds = set()
    i = 1
    while i * i <= n:
        if n % i == 0:
            ds.add(i)
            ds.add(n // i)
        i += 1
    return sorted(ds, reverse=True)


def _pick_tiles(R, HW, elem_bytes, budget):
    """Pick (row_tile, hw_tile) for a (R, HW) slab.

    row_tile is a multiple-of-8 divisor of R (or R itself when R % 8 != 0);
    hw_tile is a 128-multiple divisor of HW (or HW itself). Blocks are sized
    so the pipelined footprint of BOTH passes (double-buffered input + output
    blocks + the lane-dense stats scratch) stays inside `budget`.
    """
    target = max(256 * 1024, min(8 << 20, budget // 5))

    if HW % _LANES == 0:
        hw_candidates = [HW]
        t = HW
        while t > _LANES and t % 256 == 0:
            t //= 2
            hw_candidates.append(t)
    else:
        hw_candidates = [HW]         # only the full lane dim is a legal block

    if R % 8 == 0:
        row_candidates = [8 * d for d in _divisors_desc(R // 8)]  # descending
    else:
        row_candidates = [R]         # only the full sublane dim is legal

    def footprint(rt, ht):
        blk = rt * ht * elem_bytes
        scratch = 2 * rt * _LANES * 4 if ht % _LANES == 0 else 0
        vecs = 8 * rt * 4
        p1 = 2 * blk + scratch + 2 * vecs      # stats pass (input-only stream)
        p2 = 4 * blk + 4 * vecs                # apply pass (read + write)
        return max(p1, p2)

    for ht in hw_candidates:                   # prefer the widest lane dim
        for rt in row_candidates:              # descending: first fit is max
            if (rt * ht * elem_bytes <= target
                    and footprint(rt, ht) + (2 << 20) <= budget):
                return rt, ht
    # Degenerate shapes: smallest legal block; caller raises vmem_limit_bytes.
    return row_candidates[-1], hw_candidates[-1]


# ---------------------------------------------------------------------------
# Pass 1: per-row sum / sum-of-squares
# ---------------------------------------------------------------------------
def _stats_kernel_lane_dense(x_ref, sum_ref, sq_ref, acc_s, acc_q, *, n_chunks):
    """Accumulate lane-dense (row_tile, 128) partials with VPU adds; do the
    cross-lane (XLU) reduce + narrow (row_tile, 1) store once per row tile."""
    j = pl.program_id(1)

    @pl.when(j == 0)
    def _():
        acc_s[...] = jnp.zeros_like(acc_s)
        acc_q[...] = jnp.zeros_like(acc_q)

    def body(k, carry):
        off = pl.multiple_of(k * _LANES, _LANES)
        c = x_ref[:, pl.ds(off, _LANES)].astype(jnp.float32)
        acc_s[...] += c
        acc_q[...] += c * c
        return carry

    lax.fori_loop(0, n_chunks, body, 0, unroll=(n_chunks <= 8))

    @pl.when(j == pl.num_programs(1) - 1)
    def _():
        sum_ref[...] = jnp.sum(acc_s[...], axis=-1, keepdims=True)
        sq_ref[...] = jnp.sum(acc_q[...], axis=-1, keepdims=True)


def _stats_kernel_simple(x_ref, sum_ref, sq_ref):
    """Fallback when the lane dim is not a 128-multiple (full-HW blocks)."""
    j = pl.program_id(1)

    @pl.when(j == 0)
    def _():
        sum_ref[...] = jnp.zeros_like(sum_ref)
        sq_ref[...] = jnp.zeros_like(sq_ref)

    x = x_ref[...].astype(jnp.float32)
    sum_ref[...] += jnp.sum(x, axis=-1, keepdims=True)
    sq_ref[...] += jnp.sum(x * x, axis=-1, keepdims=True)


# ---------------------------------------------------------------------------
# Pass 2: out = x * mul + add   (per-row mul/add, lane broadcast)
# ---------------------------------------------------------------------------
def _apply_kernel(x_ref, mul_ref, add_ref, o_ref):
    x = x_ref[...].astype(jnp.float32)
    o_ref[...] = (x * mul_ref[...] + add_ref[...]).astype(o_ref.dtype)


# ---------------------------------------------------------------------------
# Wrapper
# ---------------------------------------------------------------------------
def quant_batchnorm2d(x_nchw, weight, bias, running_mean, running_var,
                      eps=EPS, momentum=MOMENTUM):
    """Training-mode forward of brevitas QuantBatchNorm2d (impl_type=STATS).

    x_nchw: (N, C, H, W); weight/bias/running_*: (C,).
    Returns (out_nchw, new_running_mean, new_running_var). Output dtype
    follows x (the native activation dtype is streamed; math is f32).
    """
    N, C, H, W = x_nchw.shape
    HW = H * W
    R = N * C
    count = N * HW

    # Free row-major reshape: rows are (n, c) pairs, lanes are spatial.
    x2d = x_nchw.reshape(R, HW)
    elem_bytes = x2d.dtype.itemsize

    budget = _vmem_budget_bytes()
    row_tile, hw_tile = _pick_tiles(R, HW, elem_bytes, budget)
    grid = (R // row_tile, HW // hw_tile)
    block_bytes = row_tile * hw_tile * elem_bytes
    vmem_limit = int(max(budget, 4 * block_bytes + (4 << 20)))

    x_spec = pl.BlockSpec((row_tile, hw_tile), lambda i, j: (i, j))
    rvec_spec = pl.BlockSpec((row_tile, 1), lambda i, j: (i, 0))

    # ---- Pass 1: per-row sum / sum-of-squares (single HBM read of x) -------
    lane_dense = (hw_tile % _LANES == 0)
    if lane_dense:
        stats_kernel = functools.partial(_stats_kernel_lane_dense,
                                         n_chunks=hw_tile // _LANES)
        scratch = [pltpu.VMEM((row_tile, _LANES), jnp.float32),
                   pltpu.VMEM((row_tile, _LANES), jnp.float32)]
    else:
        stats_kernel = _stats_kernel_simple
        scratch = []

    row_s, row_ss = pl.pallas_call(
        stats_kernel,
        out_shape=(jax.ShapeDtypeStruct((R, 1), jnp.float32),
                   jax.ShapeDtypeStruct((R, 1), jnp.float32)),
        grid=grid,
        in_specs=[x_spec],
        out_specs=(rvec_spec, rvec_spec),
        scratch_shapes=scratch,
        compiler_params=pltpu.CompilerParams(
            # Row axis is parallel (per-row partial outputs -> both v7x
            # TensorCores run the stats pass); HW axis is the reduction.
            dimension_semantics=("parallel", "arbitrary"),
            vmem_limit_bytes=vmem_limit),
    )(x2d)

    # ---- Tiny per-channel math in the wrapper (matches module formulas) ----
    s = jnp.sum(row_s.reshape(N, C), axis=0)
    ss = jnp.sum(row_ss.reshape(N, C), axis=0)
    w32 = weight.astype(jnp.float32)
    b32 = bias.astype(jnp.float32)
    mean = s / count
    sumvar = ss - s * mean                  # same formula as the PyTorch module
    var = sumvar / count                    # biased var used in the forward
    unbias_var = sumvar / (count - 1)       # matches module (count==1 -> inf, as torch)
    std = jnp.sqrt(var + eps)
    mul = w32 / std
    add = (b32 * std - mean * (w32 - 1.0) - mean) / std
    # restrict_weight / restrict_scaling_preprocess / bias_quant are identity
    # for FP types; sign * restrict(abs(mul)) round-trips to mul.

    mul_rows = jnp.broadcast_to(mul[None, :], (N, C)).reshape(R, 1)
    add_rows = jnp.broadcast_to(add[None, :], (N, C)).reshape(R, 1)

    # ---- Pass 2: streaming x * mul + add (one read + one write) ------------
    # TODO(synk): add input_output_aliases={0: 0} when callers donate x.
    out2d = pl.pallas_call(
        _apply_kernel,
        out_shape=jax.ShapeDtypeStruct((R, HW), x2d.dtype),
        grid=grid,
        in_specs=[x_spec, rvec_spec, rvec_spec],
        out_specs=x_spec,
        compiler_params=pltpu.CompilerParams(
            dimension_semantics=("parallel", "parallel"),
            vmem_limit_bytes=vmem_limit),
    )(x2d, mul_rows, add_rows)

    out_nchw = out2d.reshape(N, C, H, W)

    # Running-buffer update reuses the kernel's stats (no extra HBM pass).
    new_rm = (1.0 - momentum) * running_mean.astype(jnp.float32) + momentum * mean
    new_rv = (1.0 - momentum) * running_var.astype(jnp.float32) + momentum * unbias_var
    return out_nchw, new_rm, new_rv


# ---------------------------------------------------------------------------
# Pure-JAX reference (mirrors the PyTorch module)
# ---------------------------------------------------------------------------
def _reference(x_nchw, weight, bias, running_mean, running_var):
    N, C, H, W = x_nchw.shape
    xc = jnp.transpose(x_nchw, (1, 0, 2, 3)).reshape(C, -1)
    n = xc.shape[1]
    s = xc.sum(1)
    ss = (xc ** 2).sum(1)
    mean = s / n
    sumvar = ss - s * mean
    var = sumvar / n
    unbias_var = sumvar / (n - 1)
    std = jnp.sqrt(var + EPS)
    mul = weight / std
    add = (bias * std - mean * (weight - 1.0) - mean) / std
    out = x_nchw * mul[None, :, None, None] + add[None, :, None, None]
    new_rm = (1.0 - MOMENTUM) * running_mean + MOMENTUM * mean
    new_rv = (1.0 - MOMENTUM) * running_var + MOMENTUM * unbias_var
    return out, new_rm, new_rv


if __name__ == "__main__":
    key = jax.random.PRNGKey(0)
    kx, kw, kb = jax.random.split(key, 3)
    N, C, H, W = 2, 4, 16, 16
    x = jax.random.normal(kx, (N, C, H, W), dtype=jnp.float32)

    # Module init is ones/zeros; use non-trivial values to exercise the affine path.
    weight = 1.0 + 0.1 * jax.random.normal(kw, (C,), dtype=jnp.float32)
    bias = 0.1 * jax.random.normal(kb, (C,), dtype=jnp.float32)
    running_mean = jnp.zeros((C,), dtype=jnp.float32)
    running_var = jnp.ones((C,), dtype=jnp.float32)

    out, new_rm, new_rv = quant_batchnorm2d(x, weight, bias,
                                            running_mean, running_var)
    out = jax.block_until_ready(out)

    ref_out, ref_rm, ref_rv = _reference(x, weight, bias,
                                         running_mean, running_var)
    assert jnp.allclose(out, ref_out, atol=1e-5, rtol=1e-5), "output mismatch"
    assert jnp.allclose(new_rm, ref_rm, atol=1e-5, rtol=1e-5), "running_mean mismatch"
    assert jnp.allclose(new_rv, ref_rv, atol=1e-5, rtol=1e-5), "running_var mismatch"
    print("KERNEL_OK")
</pallas_src>

<mosaic_0001>
module attributes {stable_mosaic.version = 11 : i64} {
  func.func @_stats_kernel_lane_dense(%arg0: i32, %arg1: i32, %arg2: memref<8x256xf32, #tpu.memory_space<vmem>>, %arg3: memref<8x1xf32, #tpu.memory_space<vmem>>, %arg4: memref<8x1xf32, #tpu.memory_space<vmem>>, %arg5: memref<8x128xf32, #tpu.memory_space<vmem>>, %arg6: memref<8x128xf32, #tpu.memory_space<vmem>>) attributes {dimension_semantics = [#tpu.dimension_semantics<parallel>, #tpu.dimension_semantics<arbitrary>], iteration_bounds = array<i64: 1, 1>, scalar_prefetch = 0 : i64, scratch_operands = 2 : i64, tpu.core_type = #tpu.core_type<tc>, window_params = [{transform_indices = @transform_0, window_bounds = array<i64: 8, 256>}, {transform_indices = @transform_1, window_bounds = array<i64: 8, 1>}, {transform_indices = @transform_2, window_bounds = array<i64: 8, 1>}]} {
    %c0_i32 = arith.constant 0 : i32
    %0 = arith.cmpi eq, %arg1, %c0_i32 : i32
    %1 = arith.extui %0 : i1 to i32
    %c0_i32_0 = arith.constant 0 : i32
    %2 = arith.cmpi ne, %1, %c0_i32_0 : i32
    scf.if %2 {
      %cst = arith.constant 0.000000e+00 : f32
      %28 = vector.broadcast %cst : f32 to vector<8x128xf32>
      %c0_22 = arith.constant 0 : index
      %c0_23 = arith.constant 0 : index
      %29 = vector.load %arg5[%c0_22, %c0_23] : memref<8x128xf32, #tpu.memory_space<vmem>>, vector<8x128xf32>
      tpu.vector_store %arg5[%c0_22, %c0_23], %28 {strides = array<i32>} : memref<8x128xf32, #tpu.memory_space<vmem>>, vector<8x128xf32>,
      %cst_24 = arith.constant 0.000000e+00 : f32
      %30 = vector.broadcast %cst_24 : f32 to vector<8x128xf32>
      %c0_25 = arith.constant 0 : index
      %c0_26 = arith.constant 0 : index
      %31 = vector.load %arg6[%c0_25, %c0_26] : memref<8x128xf32, #tpu.memory_space<vmem>>, vector<8x128xf32>
      tpu.vector_store %arg6[%c0_25, %c0_26], %30 {strides = array<i32>} : memref<8x128xf32, #tpu.memory_space<vmem>>, vector<8x128xf32>,
    } else {
    }
    %c0_i32_1 = arith.constant 0 : i32
    %c128_i32 = arith.constant 128 : i32
    %3 = arith.muli %c0_i32_1, %c128_i32 : i32
    %4 = tpu.assume_multiple %3, 128 : i32
    %c0 = arith.constant 0 : index
    %5 = arith.index_cast %4 : i32 to index
    %6 = vector.load %arg2[%c0, %5] : memref<8x256xf32, #tpu.memory_space<vmem>>, vector<8x128xf32>
    %c0_2 = arith.constant 0 : index
    %c0_3 = arith.constant 0 : index
    %7 = vector.load %arg5[%c0_2, %c0_3] : memref<8x128xf32, #tpu.memory_space<vmem>>, vector<8x128xf32>
    %8 = arith.addf %7, %6 : vector<8x128xf32>
    %c0_4 = arith.constant 0 : index
    %c0_5 = arith.constant 0 : index
    %9 = vector.load %arg5[%c0_4, %c0_5] : memref<8x128xf32, #tpu.memory_space<vmem>>, vector<8x128xf32>
    tpu.vector_store %arg5[%c0_4, %c0_5], %8 {strides = array<i32>} : memref<8x128xf32, #tpu.memory_space<vmem>>, vector<8x128xf32>,
    %c0_6 = arith.constant 0 : index
    %c0_7 = arith.constant 0 : index
    %10 = vector.load %arg6[%c0_6, %c0_7] : memref<8x128xf32, #tpu.memory_space<vmem>>, vector<8x128xf32>
    %11 = arith.mulf %6, %6 : vector<8x128xf32>
    %12 = arith.addf %10, %11 : vector<8x128xf32>
    %c0_8 = arith.constant 0 : index
    %c0_9 = arith.constant 0 : index
    %13 = vector.load %arg6[%c0_8, %c0_9] : memref<8x128xf32, #tpu.memory_space<vmem>>, vector<8x128xf32>
    tpu.vector_store %arg6[%c0_8, %c0_9], %12 {strides = array<i32>} : memref<8x128xf32, #tpu.memory_space<vmem>>, vector<8x128xf32>,
    %c1_i32 = arith.constant 1 : i32
    %c128_i32_10 = arith.constant 128 : i32
    %14 = arith.muli %c1_i32, %c128_i32_10 : i32
    %15 = tpu.assume_multiple %14, 128 : i32
    %c0_11 = arith.constant 0 : index
    %16 = arith.index_cast %15 : i32 to index
    %17 = vector.load %arg2[%c0_11, %16] : memref<8x256xf32, #tpu.memory_space<vmem>>, vector<8x128xf32>
    %c0_12 = arith.constant 0 : index
    %c0_13 = arith.constant 0 : index
    %18 = vector.load %arg5[%c0_12, %c0_13] : memref<8x128xf32, #tpu.memory_space<vmem>>, vector<8x128xf32>
    %19 = arith.addf %18, %17 : vector<8x128xf32>
    %c0_14 = arith.constant 0 : index
    %c0_15 = arith.constant 0 : index
    %20 = vector.load %arg5[%c0_14, %c0_15] : memref<8x128xf32, #tpu.memory_space<vmem>>, vector<8x128xf32>
    tpu.vector_store %arg5[%c0_14, %c0_15], %19 {strides = array<i32>} : memref<8x128xf32, #tpu.memory_space<vmem>>, vector<8x128xf32>,
    %c0_16 = arith.constant 0 : index
    %c0_17 = arith.constant 0 : index
    %21 = vector.load %arg6[%c0_16, %c0_17] : memref<8x128xf32, #tpu.memory_space<vmem>>, vector<8x128xf32>
    %22 = arith.mulf %17, %17 : vector<8x128xf32>
    %23 = arith.addf %21, %22 : vector<8x128xf32>
    %c0_18 = arith.constant 0 : index
    %c0_19 = arith.constant 0 : index
    %24 = vector.load %arg6[%c0_18, %c0_19] : memref<8x128xf32, #tpu.memory_space<vmem>>, vector<8x128xf32>
    tpu.vector_store %arg6[%c0_18, %c0_19], %23 {strides = array<i32>} : memref<8x128xf32, #tpu.memory_space<vmem>>, vector<8x128xf32>,
    %c2_i32 = arith.constant 2 : i32
    %c0_i32_20 = arith.constant 0 : i32
    %25 = arith.cmpi eq, %arg1, %c0_i32_20 : i32
    %26 = arith.extui %25 : i1 to i32
    %c0_i32_21 = arith.constant 0 : i32
    %27 = arith.cmpi ne, %26, %c0_i32_21 : i32
    scf.if %27 {
      %c0_22 = arith.constant 0 : index
      %c0_23 = arith.constant 0 : index
      %28 = vector.load %arg5[%c0_22, %c0_23] : memref<8x128xf32, #tpu.memory_space<vmem>>, vector<8x128xf32>
      %cst = arith.constant dense<0.000000e+00> : vector<8xf32>
      %29 = vector.multi_reduction <add>, %28, %cst [1] : vector<8x128xf32> to vector<8xf32>
      %30 = vector.shape_cast %29 : vector<8xf32> to vector<8x1xf32>
      %c0_24 = arith.constant 0 : index
      %c0_25 = arith.constant 0 : index
      %31 = vector.load %arg3[%c0_24, %c0_25] : memref<8x1xf32, #tpu.memory_space<vmem>>, vector<8x1xf32>
      tpu.vector_store %arg3[%c0_24, %c0_25], %30 {strides = array<i32>} : memref<8x1xf32, #tpu.memory_space<vmem>>, vector<8x1xf32>,
      %c0_26 = arith.constant 0 : index
      %c0_27 = arith.constant 0 : index
      %32 = vector.load %arg6[%c0_26, %c0_27] : memref<8x128xf32, #tpu.memory_space<vmem>>, vector<8x128xf32>
      %cst_28 = arith.constant dense<0.000000e+00> : vector<8xf32>
      %33 = vector.multi_reduction <add>, %32, %cst_28 [1] : vector<8x128xf32> to vector<8xf32>
      %34 = vector.shape_cast %33 : vector<8xf32> to vector<8x1xf32>
      %c0_29 = arith.constant 0 : index
      %c0_30 = arith.constant 0 : index
      %35 = vector.load %arg4[%c0_29, %c0_30] : memref<8x1xf32, #tpu.memory_space<vmem>>, vector<8x1xf32>
      tpu.vector_store %arg4[%c0_29, %c0_30], %34 {strides = array<i32>} : memref<8x1xf32, #tpu.memory_space<vmem>>, vector<8x1xf32>,
    } else {
    }
    return
  }
  func.func @transform_0(%arg0: i32, %arg1: i32) -> (i32, i32) {
    %c0_i32 = arith.constant 0 : i32
    return %arg0, %arg1 : i32, i32
  }
  func.func @transform_1(%arg0: i32, %arg1: i32) -> (i32, i32) {
    %c0_i32 = arith.constant 0 : i32
    %c0_i32_0 = arith.constant 0 : i32
    return %arg0, %c0_i32 : i32, i32
  }
  func.func @transform_2(%arg0: i32, %arg1: i32) -> (i32, i32) {
    %c0_i32 = arith.constant 0 : i32
    %c0_i32_0 = arith.constant 0 : i32
    return %arg0, %c0_i32 : i32, i32
  }
}

</mosaic_0001>

<llo_original>
// kernel: tpu_custom_call.1
$region0: #{tpu_custom_call.1}
  #allocation0 [shape = 'u32[]', space=smem, size = 0x4, offset = 0x4, fixed_abs, tag = 'smem constant byte address 0x4 - core index']
  #allocation1 [shape = 'u32[144,128]{1,0:T(1,128)}', space=vmem, size = 0x12000, scoped, tag = 'internal scratch']
  #allocation2 [shape = 'f32[8,128]{1,0:T(8,128)}', space=vmem, size = 0x1000, scoped, tag = 'scratch operand']
  #allocation3 [shape = 'f32[8,128]{1,0:T(8,128)}', space=vmem, size = 0x1000, scoped, tag = 'scratch operand']
  %s0 = inlined_call_operand.hbm [shape: f32[8,256], index: 0, kind: input, shape index: {}]
  %s1 = inlined_call_operand.vmem [shape: f32[8,1], index: 1, kind: output, shape index: {0}]
  %s2 = inlined_call_operand.vmem [shape: f32[8,1], index: 2, kind: output, shape index: {1}]
  %3 = xla_tuple %s1, %s2
  %s4 = sld [smem:[#allocation0]]
  $region34: #{tpu_custom_call.1} parent=0
    _
  %s6 = ssub.s32 1, %s4
  %s7 = scalar_select 0, %s6, %s4
  $region1: #{tpu_custom_call.1} parent=0
    #allocation4 [shape = 'u8[8192]{0}', space=vmem, size = 0x2000, scoped, tag = 'input window, operand 0, single buffered']
    #allocation5 [shape = 's32[1]{0}', space=sflag, size = 0x4, scoped, tag = 'scoped memory for tpu_custom_call.1']
    %8 = vsyncpa [#allocation5], 0
    // Predicated region
    $region2: #{tpu_custom_call.1} parent=1 // pred_check
      _
    $region3: #{tpu_custom_call.1} parent=1 // pred_check_branch
      %10 = sbr.rel (0) target = $region5
    $region4: #{tpu_custom_call.1} parent=1 // pred_region
      %s12 = ssub.s32 256, 256
      %13 = vsyncadd [#allocation5], %s12
      %s15 = sshll.u32 [#allocation4], 4
      %s16 = int_to_ptr.vmem [resolvable:$true] %s15
      %18 = dma.hbm_to_vmem [thread:$0]  %s0, 256, %s16, [#allocation5]
    $region5: #{tpu_custom_call.1} parent=1 // pred_fallthru
      _
    // Predicated region
    $region6: #{tpu_custom_call.1} parent=1 // pred_check
      _
    $region7: #{tpu_custom_call.1} parent=1 // pred_check_branch
      %20 = sbr.rel (0) target = $region9
    $region8: #{tpu_custom_call.1} parent=1 // pred_region
      %21 = dma.done [#allocation5], 256
    $region9: #{tpu_custom_call.1} parent=1 // pred_fallthru
      _
    %p22 = scmp.eq.s32.totalorder 0, 0
    // Predicated region
    $region10: #{tpu_custom_call.1} parent=1 // pred_check
      %p23 = pneg %p22
    $region11: #{tpu_custom_call.1} parent=1 // pred_check_branch
      %25 = sbr.rel (%p23) target = $region13
    $region12: #{tpu_custom_call.1} parent=1 // pred_region
      %26 = vst [vmem:[#allocation2] sm:$0xff] 0.0
      %27 = vst [vmem:[#allocation3] sm:$0xff] 0.0
    $region13: #{tpu_custom_call.1} parent=1 // pred_fallthru
      _
    %v28 = vld [vmem:[#allocation4] sm:$0xff]
    %v29 = vld [vmem:[#allocation2] sm:$0xff]
    %v30 = vadd.f32 %v29, %v28
    %31 = vst [vmem:[#allocation2] sm:$0xff] %v30
    %v32 = vld [vmem:[#allocation3] sm:$0xff]
    %v33 = vmul.f32 %v28, %v28
    %v34 = vadd.f32 %v32, %v33
    %35 = vst [vmem:[#allocation3] sm:$0xff] %v34
    %s36 = scalar_lea.vmem [#allocation4], 8
    %v37 = vld [vmem:[%s36] sm:$0xff]
    %v38 = vld [vmem:[#allocation2] sm:$0xff]
    %v39 = vadd.f32 %v38, %v37
    %40 = vst [vmem:[#allocation2] sm:$0xff] %v39
    %v41 = vld [vmem:[#allocation3] sm:$0xff]
    %v42 = vmul.f32 %v37, %v37
    %v43 = vadd.f32 %v41, %v42
    %44 = vst [vmem:[#allocation3] sm:$0xff] %v43
    // Predicated region
    $region14: #{tpu_custom_call.1} parent=1 // pred_check
      %p45 = pneg %p22
    $region15: #{tpu_custom_call.1} parent=1 // pred_check_branch
      %47 = sbr.rel (%p45) target = $region17
    $region16: #{tpu_custom_call.1} parent=1 // pred_region
      %v48 = vld [vmem:[#allocation2] sm:$0xff]
      %49 = vadd.xlane.f32.xlu0 %v48
      %v50 = vpop.xlane.xlu0 %49
      %vm51 = vcmask 7168
      %52 = vst.msk [vmem:[%s1] sm:$0xff] %vm51, %v50
      %v53 = vld [vmem:[#allocation3] sm:$0xff]
      %54 = vadd.xlane.f32.xlu0 %v53
      %v55 = vpop.xlane.xlu0 %54
      %56 = vst.msk [vmem:[%s2] sm:$0xff] %vm51, %v55
    $region17: #{tpu_custom_call.1} parent=1 // pred_fallthru
      _
    // Predicated region
    $region18: #{tpu_custom_call.1} parent=1 // pred_check
      _
    $region19: #{tpu_custom_call.1} parent=1 // pred_check_branch
      %58 = sbr.rel (0) target = $region21
    $region20: #{tpu_custom_call.1} parent=1 // pred_region
      _
    $region21: #{tpu_custom_call.1} parent=1 // pred_fallthru
      _
    // Predicated region
    $region22: #{tpu_custom_call.1} parent=1 // pred_check
      _
    $region23: #{tpu_custom_call.1} parent=1 // pred_check_branch
      %60 = sbr.rel (0) target = $region25
    $region24: #{tpu_custom_call.1} parent=1 // pred_region
      _
    $region25: #{tpu_custom_call.1} parent=1 // pred_fallthru
      _
    // Predicated region
    $region26: #{tpu_custom_call.1} parent=1 // pred_check
      _
    $region27: #{tpu_custom_call.1} parent=1 // pred_check_branch
      %62 = sbr.rel (0) target = $region29
    $region28: #{tpu_custom_call.1} parent=1 // pred_region
      _
    $region29: #{tpu_custom_call.1} parent=1 // pred_fallthru
      _
    // Predicated region
    $region30: #{tpu_custom_call.1} parent=1 // pred_check
      _
    $region31: #{tpu_custom_call.1} parent=1 // pred_check_branch
      %64 = sbr.rel (0) target = $region33
    $region32: #{tpu_custom_call.1} parent=1 // pred_region
      _
    $region33: #{tpu_custom_call.1} parent=1 // pred_fallthru
      _
    %65 = vsyncpa [#allocation5], 1

</llo_original>
